<compile_context>
chip_gen: v7x
topology: tpu7x:2x2x1
jax: 0.10.0
libtpu: 0.0.40
codegen_flags: <defaults>
</compile_context>

<pallas_src>
import jax
import jax.numpy as jnp
from jax.experimental import pallas as pl
from jax.experimental.pallas import tpu as pltpu

BN_EPS = 1e-5


def _predictor_kernel(x_ref, w1_ref, g_ref, beta_ref, w2_ref, b2_ref, o_ref):
    """Grid = (out_splits, hidden_tiles). One step = one (out tile, hidden tile)."""
    k = pl.program_id(1)  # reduction (hidden-tile) axis

    # ---- Linear 1 for this hidden tile (bf16 MXU, f32 accumulation) ----
    # x arrives in its native dtype; cast in-kernel (avoids a wrapper-side HBM
    # round-trip).  b1 is intentionally omitted: training-mode BN subtracts the
    # batch mean, so a per-feature constant bias has zero effect on the output.
    x = x_ref[...]
    if x.dtype != w1_ref.dtype:
        x = x.astype(w1_ref.dtype)
    h = jnp.dot(x, w1_ref[...], preferred_element_type=jnp.float32)   # (B, TH)

    # ---- BatchNorm1d (training mode: batch mean, biased variance) + ReLU ----
    mean = jnp.mean(h, axis=0, keepdims=True)                         # (1, TH)
    hm = h - mean                                                     # reused
    var = jnp.mean(hm * hm, axis=0, keepdims=True)
    scale = g_ref[...] * jax.lax.rsqrt(var + BN_EPS)                  # gamma folded in
    h_act = jnp.maximum(hm * scale + beta_ref[...], 0.0)              # (B, TH)

    # ---- Linear 2 partial contribution (bf16 MXU, f32 result) ----
    contrib = jnp.dot(h_act.astype(w2_ref.dtype), w2_ref[...],
                      preferred_element_type=jnp.float32)             # (B, TO)

    # Accumulate directly into the resident f32 output block; fold b2 into the
    # first hidden-tile write (no separate scratch accumulator, no finalize copy).
    @pl.when(k == 0)
    def _init():
        o_ref[...] = (contrib + b2_ref[...]).astype(o_ref.dtype)

    @pl.when(k > 0)
    def _accum():
        o_ref[...] = o_ref[...] + contrib.astype(o_ref.dtype)


def _pick_hidden_tile(hidden, max_tile=256):
    """Largest tile <= max_tile that is a multiple of 128 and divides hidden.

    hidden is always a multiple of 128 (prepare_params pads).  max_tile=256 is a
    safe default for v7x's 64 MiB VMEM; on v6e with real SimSiam shapes
    (hidden=512) max_tile=512 collapses the reduction to one step.
    """
    assert hidden % 128 == 0
    tile = min(max_tile, hidden)
    while hidden % tile != 0:
        tile -= 128
    return tile


def prepare_params(params, *, mm_dtype=jnp.bfloat16):
    """One-time cast / reshape / zero-pad of the weights. Keep OFF the hot path
    so per-step calls pay no extra HBM passes for dtype conversion."""
    in_dim, hidden = params["w1"].shape
    out_dim = params["w2"].shape[1]
    hidden_pad = ((hidden + 127) // 128) * 128
    pad_h = hidden_pad - hidden

    w1 = params["w1"].astype(mm_dtype)
    w2 = params["w2"].astype(mm_dtype)
    gamma = params["gamma"].astype(jnp.float32)
    beta = params["beta"].astype(jnp.float32)
    if pad_h:
        # Zero-padded hidden features are numerically inert: h=0, gamma=beta=0
        # -> ReLU output 0, and the corresponding W2 rows are 0.
        w1 = jnp.pad(w1, ((0, 0), (0, pad_h)))
        w2 = jnp.pad(w2, ((0, pad_h), (0, 0)))
        gamma = jnp.pad(gamma, (0, pad_h))
        beta = jnp.pad(beta, (0, pad_h))

    return {
        "w1": w1,                                         # (in_dim, hidden_pad)
        "w2": w2,                                         # (hidden_pad, out_dim)
        "gamma": gamma.reshape(1, hidden_pad),
        "beta": beta.reshape(1, hidden_pad),
        "b2": params["b2"].reshape(1, out_dim).astype(jnp.float32),
        # NOTE: params["b1"] is deliberately dropped (dead under training-mode BN).
    }


def prediction_mlp_forward(x, prepared, *, hidden_tile=None, out_splits=1):
    """x: (B, in_dim), f32 or bf16. prepared: output of prepare_params."""
    B, in_dim = x.shape
    w1, w2 = prepared["w1"], prepared["w2"]
    gamma, beta, b2 = prepared["gamma"], prepared["beta"], prepared["b2"]
    hidden = w1.shape[1]
    out_dim = w2.shape[1]

    if hidden_tile is None:
        hidden_tile = _pick_hidden_tile(hidden)
    assert hidden % hidden_tile == 0 and hidden_tile % 128 == 0
    num_k = hidden // hidden_tile

    # Optional v7x megacore split over out_dim (set out_splits=2 there).
    if out_splits < 1 or out_dim % out_splits != 0 or (
            out_splits > 1 and (out_dim // out_splits) % 128 != 0):
        out_splits = 1
    out_tile = out_dim // out_splits

    mm_itemsize = jnp.dtype(w1.dtype).itemsize
    x_itemsize = jnp.dtype(x.dtype).itemsize

    # ---- VMEM budget (x single-buffered, no scratch accumulator) ----
    vmem_bytes = (
        B * in_dim * x_itemsize                 # x, resident, Buffered(1)
        + 2 * in_dim * hidden_tile * mm_itemsize    # W1 tile (double-buffered)
        + 2 * hidden_tile * out_tile * mm_itemsize  # W2 tile (double-buffered)
        + 2 * 2 * hidden_tile * 4                   # gamma / beta slabs
        + 2 * out_tile * 4                          # b2 slab
        + 2 * B * out_tile * 4                      # output block
        + 3 * B * hidden_tile * 4                   # h / hm / h_act temporaries
    )
    try:
        vmem_cap = pltpu.get_tpu_info().vmem_capacity_bytes
    except Exception:
        vmem_cap = 64 << 20                         # conservative (v7x per-TC)
    vmem_limit = int(max(16 << 20, min(vmem_cap - (16 << 20), 2 * vmem_bytes)))

    flops = out_splits * 2 * B * in_dim * hidden + 2 * B * hidden * out_dim
    bytes_accessed = (
        B * in_dim * x_itemsize
        + out_splits * in_dim * hidden * mm_itemsize
        + hidden * out_dim * mm_itemsize
        + (2 * out_splits * hidden + out_dim) * 4
        + B * out_dim * 4
    )

    x_spec = pl.BlockSpec((B, in_dim), lambda j, k: (0, 0),
                          pipeline_mode=pl.Buffered(1))
    if out_splits == 1:
        b2_spec = pl.BlockSpec((1, out_tile), lambda j, k: (0, j),
                               pipeline_mode=pl.Buffered(1))
    else:
        b2_spec = pl.BlockSpec((1, out_tile), lambda j, k: (0, j))

    grid_spec = pltpu.PrefetchScalarGridSpec(
        num_scalar_prefetch=0,
        grid=(out_splits, num_k),
        in_specs=[
            x_spec,                                               # x (resident)
            pl.BlockSpec((in_dim, hidden_tile), lambda j, k: (0, k)),   # W1 cols
            pl.BlockSpec((1, hidden_tile), lambda j, k: (0, k)),        # gamma
            pl.BlockSpec((1, hidden_tile), lambda j, k: (0, k)),        # beta
            pl.BlockSpec((hidden_tile, out_tile), lambda j, k: (k, j)), # W2 rows
            b2_spec,                                                    # b2
        ],
        # Output block is the f32 accumulator, resident across the k (hidden) axis.
        out_specs=pl.BlockSpec((B, out_tile), lambda j, k: (0, j)),
    )

    return pl.pallas_call(
        _predictor_kernel,
        out_shape=jax.ShapeDtypeStruct((B, out_dim), jnp.float32),
        grid_spec=grid_spec,
        compiler_params=pltpu.CompilerParams(
            # j axis is embarrassingly parallel (out_dim split, v7x megacore);
            # k axis is the hidden reduction into the resident output block.
            dimension_semantics=("parallel", "arbitrary"),
            vmem_limit_bytes=vmem_limit,
        ),
        cost_estimate=pl.CostEstimate(
            flops=flops,
            transcendentals=out_splits * hidden,
            bytes_accessed=bytes_accessed),
    )(x, w1, gamma, beta, w2, b2)


def init_params(key, in_dim, hidden_dim, out_dim):
    """Deterministic init mimicking PyTorch defaults (uniform fan-in bounds).
    Weights stored transposed vs. PyTorch, i.e. (in_features, out_features)."""
    k1, k2, k3, k4 = jax.random.split(key, 4)
    bound1 = 1.0 / jnp.sqrt(in_dim)
    bound2 = 1.0 / jnp.sqrt(hidden_dim)
    return {
        "w1": jax.random.uniform(k1, (in_dim, hidden_dim), jnp.float32,
                                 -bound1, bound1),
        "b1": jax.random.uniform(k2, (hidden_dim,), jnp.float32,
                                 -bound1, bound1),
        "gamma": jnp.ones((hidden_dim,), jnp.float32),
        "beta": jnp.zeros((hidden_dim,), jnp.float32),
        "w2": jax.random.uniform(k3, (hidden_dim, out_dim), jnp.float32,
                                 -bound2, bound2),
        "b2": jax.random.uniform(k4, (out_dim,), jnp.float32,
                                 -bound2, bound2),
    }


def reference_forward(x, params):
    """Pure-JAX f32 reference (PyTorch training-mode semantics, b1 included)."""
    h = x @ params["w1"] + params["b1"]
    mean = jnp.mean(h, axis=0, keepdims=True)
    var = jnp.mean((h - mean) ** 2, axis=0, keepdims=True)
    h = (h - mean) * jax.lax.rsqrt(var + BN_EPS)
    h = h * params["gamma"] + params["beta"]
    h = jnp.maximum(h, 0.0)
    return h @ params["w2"] + params["b2"]


def reference_forward_matched_precision(x, params):
    """Same precision recipe as the kernel (bf16 matmul operands, f32 accum).
    b1 is still added here, demonstrating that dropping it in the kernel is
    exact under training-mode BatchNorm."""
    h = jnp.dot(x.astype(jnp.bfloat16), params["w1"].astype(jnp.bfloat16),
                preferred_element_type=jnp.float32) + params["b1"]
    mean = jnp.mean(h, axis=0, keepdims=True)
    hm = h - mean
    var = jnp.mean(hm * hm, axis=0, keepdims=True)
    h = hm * jax.lax.rsqrt(var + BN_EPS)
    h = h * params["gamma"] + params["beta"]
    h = jnp.maximum(h, 0.0)
    return jnp.dot(h.astype(jnp.bfloat16), params["w2"].astype(jnp.bfloat16),
                   preferred_element_type=jnp.float32) + params["b2"]


if __name__ == "__main__":
    # Small but lane-aligned shapes (multiples of 128 on the lane axis). Real
    # SimSiam sizes are in=2048, hidden=512, out=2048 with B >= 256.
    B, IN_DIM, HIDDEN_DIM, OUT_DIM = 128, 256, 256, 256

    key = jax.random.PRNGKey(0)
    kx, kp = jax.random.split(key)
    x = jax.random.normal(kx, (B, IN_DIM), jnp.float32)
    params = init_params(kp, IN_DIM, HIDDEN_DIM, OUT_DIM)

    prepared = prepare_params(params)          # one-time cast/pad, off hot path

    # Default path: 2 hidden tiles (exercises the o_ref accumulation), 1 out tile.
    out = prediction_mlp_forward(x, prepared, hidden_tile=128)
    out = jax.block_until_ready(out)
    assert out.shape == (B, OUT_DIM)
    assert out.dtype == jnp.float32

    ref_same_prec = reference_forward_matched_precision(x, params)
    ref_f32 = reference_forward(x, params)
    assert jnp.allclose(out, ref_same_prec, atol=2e-2, rtol=2e-2), \
        "mismatch vs matched-precision (bf16 matmul) reference"
    assert jnp.allclose(out, ref_f32, atol=5e-2, rtol=5e-2), \
        "mismatch vs f32 reference"

    # v7x-style megacore path: 2-way out_dim split ("parallel" leading axis).
    out_split = prediction_mlp_forward(x, prepared, hidden_tile=128, out_splits=2)
    out_split = jax.block_until_ready(out_split)
    assert jnp.allclose(out_split, out, atol=1e-3, rtol=1e-3), \
        "out_splits=2 path disagrees with out_splits=1 path"

    print("KERNEL_OK")
</pallas_src>

<mosaic_0001>
module attributes {stable_mosaic.version = 11 : i64} {
  func.func @_predictor_kernel(%arg0: i32, %arg1: i32, %arg2: memref<128x256xf32, #tpu.memory_space<vmem>>, %arg3: memref<256x128xbf16, #tpu.memory_space<vmem>>, %arg4: memref<1x128xf32, #tpu.memory_space<vmem>>, %arg5: memref<1x128xf32, #tpu.memory_space<vmem>>, %arg6: memref<128x256xbf16, #tpu.memory_space<vmem>>, %arg7: memref<1x256xf32, #tpu.memory_space<vmem>>, %arg8: memref<128x256xf32, #tpu.memory_space<vmem>>) attributes {dimension_semantics = [#tpu.dimension_semantics<parallel>, #tpu.dimension_semantics<arbitrary>], iteration_bounds = array<i64: 1, 2>, scalar_prefetch = 0 : i64, scratch_operands = 0 : i64, tpu.core_type = #tpu.core_type<tc>, window_params = [{pipeline_mode = #tpu.pipeline_mode<synchronous>, transform_indices = @transform_0, window_bounds = array<i64: 128, 256>}, {transform_indices = @transform_1, window_bounds = array<i64: 256, 128>}, {transform_indices = @transform_2, window_bounds = array<i64: 1, 128>}, {transform_indices = @transform_3, window_bounds = array<i64: 1, 128>}, {transform_indices = @transform_4, window_bounds = array<i64: 128, 256>}, {pipeline_mode = #tpu.pipeline_mode<synchronous>, transform_indices = @transform_5, window_bounds = array<i64: 1, 256>}, {transform_indices = @transform_6, window_bounds = array<i64: 128, 256>}]} {
    %c0 = arith.constant 0 : index
    %c0_0 = arith.constant 0 : index
    %0 = vector.load %arg2[%c0, %c0_0] : memref<128x256xf32, #tpu.memory_space<vmem>>, vector<128x256xf32>
    %1 = arith.truncf %0 : vector<128x256xf32> to vector<128x256xbf16>
    %c0_1 = arith.constant 0 : index
    %c0_2 = arith.constant 0 : index
    %2 = vector.load %arg3[%c0_1, %c0_2] : memref<256x128xbf16, #tpu.memory_space<vmem>>, vector<256x128xbf16>
    %cst = arith.constant dense<0.000000e+00> : vector<128x128xf32>
    %3 = tpu.matmul %1, %2, %cst {dimension_numbers = #tpu.dot_dimension_numbers<[1], [0], [0], [1], [0, 0, 1, 1], [], []>} : vector<128x256xbf16>, vector<256x128xbf16>, vector<128x128xf32> -> vector<128x128xf32>
    %cst_3 = arith.constant dense<0.000000e+00> : vector<128xf32>
    %4 = vector.multi_reduction <add>, %3, %cst_3 [0] : vector<128x128xf32> to vector<128xf32>
    %5 = vector.shape_cast %4 : vector<128xf32> to vector<1x128xf32>
    %cst_4 = arith.constant 1.280000e+02 : f32
    %6 = vector.broadcast %cst_4 : f32 to vector<1x128xf32>
    %7 = arith.divf %5, %6 : vector<1x128xf32>
    %8 = vector.broadcast %7 : vector<1x128xf32> to vector<128x128xf32>
    %9 = arith.subf %3, %8 : vector<128x128xf32>
    %10 = arith.mulf %9, %9 : vector<128x128xf32>
    %cst_5 = arith.constant dense<0.000000e+00> : vector<128xf32>
    %11 = vector.multi_reduction <add>, %10, %cst_5 [0] : vector<128x128xf32> to vector<128xf32>
    %12 = vector.shape_cast %11 : vector<128xf32> to vector<1x128xf32>
    %cst_6 = arith.constant 1.280000e+02 : f32
    %13 = vector.broadcast %cst_6 : f32 to vector<1x128xf32>
    %14 = arith.divf %12, %13 : vector<1x128xf32>
    %c0_7 = arith.constant 0 : index
    %c0_8 = arith.constant 0 : index
    %15 = vector.load %arg4[%c0_7, %c0_8] : memref<1x128xf32, #tpu.memory_space<vmem>>, vector<1x128xf32>
    %cst_9 = arith.constant 9.99999974E-6 : f32
    %16 = vector.broadcast %cst_9 : f32 to vector<1x128xf32>
    %17 = arith.addf %14, %16 : vector<1x128xf32>
    %18 = math.rsqrt %17 : vector<1x128xf32>
    %19 = arith.mulf %15, %18 : vector<1x128xf32>
    %20 = vector.broadcast %19 : vector<1x128xf32> to vector<128x128xf32>
    %21 = arith.mulf %9, %20 : vector<128x128xf32>
    %c0_10 = arith.constant 0 : index
    %c0_11 = arith.constant 0 : index
    %22 = vector.load %arg5[%c0_10, %c0_11] : memref<1x128xf32, #tpu.memory_space<vmem>>, vector<1x128xf32>
    %23 = vector.broadcast %22 : vector<1x128xf32> to vector<128x128xf32>
    %24 = arith.addf %21, %23 : vector<128x128xf32>
    %cst_12 = arith.constant 0.000000e+00 : f32
    %25 = vector.broadcast %cst_12 : f32 to vector<128x128xf32>
    %26 = arith.maximumf %24, %25 : vector<128x128xf32>
    %27 = arith.truncf %26 : vector<128x128xf32> to vector<128x128xbf16>
    %c0_13 = arith.constant 0 : index
    %c0_14 = arith.constant 0 : index
    %28 = vector.load %arg6[%c0_13, %c0_14] : memref<128x256xbf16, #tpu.memory_space<vmem>>, vector<128x256xbf16>
    %cst_15 = arith.constant dense<0.000000e+00> : vector<128x256xf32>
    %29 = tpu.matmul %27, %28, %cst_15 {dimension_numbers = #tpu.dot_dimension_numbers<[1], [0], [0], [1], [0, 0, 1, 1], [], []>} : vector<128x128xbf16>, vector<128x256xbf16>, vector<128x256xf32> -> vector<128x256xf32>
    %c0_i32 = arith.constant 0 : i32
    %30 = arith.cmpi eq, %arg1, %c0_i32 : i32
    %31 = arith.extui %30 : i1 to i32
    %c0_i32_16 = arith.constant 0 : i32
    %32 = arith.cmpi ne, %31, %c0_i32_16 : i32
    scf.if %32 {
      %c0_19 = arith.constant 0 : index
      %c0_20 = arith.constant 0 : index
      %36 = vector.load %arg7[%c0_19, %c0_20] : memref<1x256xf32, #tpu.memory_space<vmem>>, vector<1x256xf32>
      %37 = vector.broadcast %36 : vector<1x256xf32> to vector<128x256xf32>
      %38 = arith.addf %29, %37 : vector<128x256xf32>
      %c0_21 = arith.constant 0 : index
      %c0_22 = arith.constant 0 : index
      %39 = vector.load %arg8[%c0_21, %c0_22] : memref<128x256xf32, #tpu.memory_space<vmem>>, vector<128x256xf32>
      tpu.vector_store %arg8[%c0_21, %c0_22], %38 {strides = array<i32>} : memref<128x256xf32, #tpu.memory_space<vmem>>, vector<128x256xf32>,
    } else {
    }
    %c0_i32_17 = arith.constant 0 : i32
    %33 = arith.cmpi sgt, %arg1, %c0_i32_17 : i32
    %34 = arith.extui %33 : i1 to i32
    %c0_i32_18 = arith.constant 0 : i32
    %35 = arith.cmpi ne, %34, %c0_i32_18 : i32
    scf.if %35 {
      %c0_19 = arith.constant 0 : index
      %c0_20 = arith.constant 0 : index
      %36 = vector.load %arg8[%c0_19, %c0_20] : memref<128x256xf32, #tpu.memory_space<vmem>>, vector<128x256xf32>
      %37 = arith.addf %36, %29 : vector<128x256xf32>
      %c0_21 = arith.constant 0 : index
      %c0_22 = arith.constant 0 : index
      %38 = vector.load %arg8[%c0_21, %c0_22] : memref<128x256xf32, #tpu.memory_space<vmem>>, vector<128x256xf32>
      tpu.vector_store %arg8[%c0_21, %c0_22], %37 {strides = array<i32>} : memref<128x256xf32, #tpu.memory_space<vmem>>, vector<128x256xf32>,
    } else {
    }
    return
  }
  func.func @transform_0(%arg0: i32, %arg1: i32) -> (i32, i32) {
    %c0_i32 = arith.constant 0 : i32
    %c0_i32_0 = arith.constant 0 : i32
    %c0_i32_1 = arith.constant 0 : i32
    return %c0_i32, %c0_i32_0 : i32, i32
  }
  func.func @transform_1(%arg0: i32, %arg1: i32) -> (i32, i32) {
    %c0_i32 = arith.constant 0 : i32
    %c0_i32_0 = arith.constant 0 : i32
    return %c0_i32, %arg1 : i32, i32
  }
  func.func @transform_2(%arg0: i32, %arg1: i32) -> (i32, i32) {
    %c0_i32 = arith.constant 0 : i32
    %c0_i32_0 = arith.constant 0 : i32
    return %c0_i32, %arg1 : i32, i32
  }
  func.func @transform_3(%arg0: i32, %arg1: i32) -> (i32, i32) {
    %c0_i32 = arith.constant 0 : i32
    %c0_i32_0 = arith.constant 0 : i32
    return %c0_i32, %arg1 : i32, i32
  }
  func.func @transform_4(%arg0: i32, %arg1: i32) -> (i32, i32) {
    %c0_i32 = arith.constant 0 : i32
    return %arg1, %arg0 : i32, i32
  }
  func.func @transform_5(%arg0: i32, %arg1: i32) -> (i32, i32) {
    %c0_i32 = arith.constant 0 : i32
    %c0_i32_0 = arith.constant 0 : i32
    return %c0_i32, %arg0 : i32, i32
  }
  func.func @transform_6(%arg0: i32, %arg1: i32) -> (i32, i32) {
    %c0_i32 = arith.constant 0 : i32
    %c0_i32_0 = arith.constant 0 : i32
    return %c0_i32, %arg0 : i32, i32
  }
}

</mosaic_0001>

<llo_original>
// kernel: tpu_custom_call.1
$region0: #{tpu_custom_call.1}
  #allocation0 [shape = 'u32[]', space=smem, size = 0x4, offset = 0x4, fixed_abs, tag = 'smem constant byte address 0x4 - core index']
  #allocation1 [shape = 'u32[144,128]{1,0:T(1,128)}', space=vmem, size = 0x12000, scoped, tag = 'internal scratch']
  %s0 = inlined_call_operand.hbm [shape: f32[128,256], index: 0, kind: input, shape index: {}]
  %s1 = inlined_call_operand.hbm [shape: bf16[256,256], index: 1, kind: input, shape index: {}]
  %s2 = inlined_call_operand.vmem [shape: f32[1,256], index: 2, kind: input, shape index: {}]
  %s3 = inlined_call_operand.vmem [shape: f32[1,256], index: 3, kind: input, shape index: {}]
  %s4 = inlined_call_operand.hbm [shape: bf16[256,256], index: 4, kind: input, shape index: {}]
  %s5 = inlined_call_operand.vmem [shape: f32[1,256], index: 5, kind: input, shape index: {}]
  %s6 = inlined_call_operand.hbm [shape: f32[128,256], index: 6, kind: output, shape index: {}]
  %s7 = sld [smem:[#allocation0]]
  $region77: #{tpu_custom_call.1} parent=0
    _
  %s9 = ssub.s32 1, %s7
  %s10 = scalar_select 0, %s9, %s7
  $region1: #{tpu_custom_call.1} parent=0
    #allocation2 [shape = 'u8[131072]{0}', space=vmem, size = 0x20000, scoped, tag = 'input window, operand 0, single buffered']
    #allocation3 [shape = 's32[2]{0}', space=sflag, size = 0x8, scoped, tag = 'scoped memory for tpu_custom_call.1']
    #allocation4 [shape = 's32[2]{0}', space=sflag, size = 0x8, scoped, tag = 'scoped memory for tpu_custom_call.1']
    #allocation5 [shape = 'u8[131072]{0}', space=vmem, size = 0x20000, scoped, tag = 'input window, operand 1']
    #allocation6 [shape = 's32[2]{0}', space=sflag, size = 0x8, scoped, tag = 'scoped memory for tpu_custom_call.1']
    #allocation7 [shape = 'u8[131072]{0}', space=vmem, size = 0x20000, scoped, tag = 'input window, operand 4']
    #allocation8 [shape = 'u8[131072]{0}', space=vmem, size = 0x20000, scoped, tag = 'output window, operand 0, single buffered']
    %11 = vsyncpa [#allocation3], 0
    %12 = vsyncpa [#allocation6], 0
    %s13 = scalar_lea.sflag [#allocation6], 1
    %14 = vsyncpa %s13, 0
    %15 = vsyncpa [#allocation4], 0
    loop: start=0, step=1, limit=4
    $region2: #{tpu_custom_call.1} parent=1 // loop_pre_header
      _
    $region3: #{tpu_custom_call.1} parent=1 // loop_header
      %s17 = sphi 0, %s21
      %p18 = scmp.ge.s32.totalorder %s17, 4
      %s24 = sphi 0, %s36
      %s25 = sphi 0, %s32
      %s26 = sphi 0, %s24
      %s27 = sphi 0, %s25
      %s28 = sphi 0, %s26
      %s29 = sphi 0, %s27
      %s37 = sphi 0, %s37
      %s39 = sphi 0, %s37
      %s40 = sphi 0, %s39
      %s54 = sphi 0, %s40
      %s60 = sphi 0, %s62
      %s63 = sphi 0, %s60
      %s64 = sphi 0, %s63
      %s80 = sphi 0, %s64
      %s86 = sphi 0, %s88
      %s89 = sphi 0, %s86
      %s90 = sphi 0, %s89
      %s106 = sphi 0, %s90
      %s112 = sphi 0, %s114
      %s115 = sphi 0, %s112
      %s116 = sphi 0, %s115
      %s132 = sphi 0, %s116
      %s140 = sphi 0, %s142
      %s143 = sphi 0, %s140
      %s144 = sphi 0, %s143
      %s160 = sphi 0, %s144
      %s166 = sphi 0, %s168
      %s169 = sphi 0, %s166
      %s170 = sphi 0, %s169
      %s186 = sphi 0, %s170
      %s192 = sphi 0, %s194
      %s195 = sphi 0, %s192
      %s196 = sphi 0, %s195
      %s212 = sphi 0, %s196
    $region4: #{tpu_custom_call.1} parent=1 // loop_header_branch
      %20 = sbr.rel (%p18) target = $region8
    $region5: #{tpu_custom_call.1} parent=1 // loop_body
      %s22 = ssub.s32 %s17, 1
      %s23 = ssub.s32 %s17, 2
      %s30 = sadd.s32 1, %s25
      %p31 = scmp.ge.s32.totalorder %s30, 2
      %s32 = scalar_select %p31, 0, %s30
      %s33 = sadd.s32 1, %s24
      %s34 = scalar_select %p31, %s33, %s24
      %p35 = scmp.ge.s32.totalorder %s34, 1
      %s36 = scalar_select %p35, 0, %s34
      %s38 = sadd.s32 %s37, 1
      %p41 = scmp.eq.s32.totalorder %s17, 1
      %p42 = scmp.ne.s32.totalorder %s37, %s39
      %p43 = scmp.eq.s32.totalorder %s17, 0
      %p44 = por %p42, %p43
      %p45 = scmp.ne.s32.totalorder %s37, %s39
      %p46 = scmp.eq.s32.totalorder %s22, 1
      %p47 = por %p45, %p46
      %p48 = scmp.ne.s32.totalorder %s39, %s40
      %p49 = scmp.eq.s32.totalorder %s22, 0
      %p50 = por %p48, %p49
      %p51 = scmp.ne.s32.totalorder %s39, %s40
      %p52 = scmp.eq.s32.totalorder %s23, 1
      %p53 = por %p51, %p52
      %p55 = scmp.ne.s32.totalorder %s40, %s54
      %p56 = scmp.eq.s32.totalorder %s23, 0
      %p57 = por %p55, %p56
      %s58 = ssub.s32 %s25, %s32
      %p59 = scmp.eq.s32.totalorder %s58, 0
      %s61 = sadd.s32 %s60, 1
      %s62 = scalar_select %p59, %s60, %s61
      %p65 = pneg %p59
      %p66 = scmp.eq.s32.totalorder %s17, 1
      %p67 = por %p65, %p66
      %p68 = scmp.ne.s32.totalorder %s60, %s63
      %p69 = scmp.eq.s32.totalorder %s17, 0
      %p70 = por %p68, %p69
      %p71 = scmp.ne.s32.totalorder %s60, %s63
      %p72 = scmp.eq.s32.totalorder %s22, 1
      %p73 = por %p71, %p72
      %p74 = scmp.ne.s32.totalorder %s63, %s64
      %p75 = scmp.eq.s32.totalorder %s22, 0
      %p76 = por %p74, %p75
      %p77 = scmp.ne.s32.totalorder %s63, %s64
      %p78 = scmp.eq.s32.totalorder %s23, 1
      %p79 = por %p77, %p78
      %p81 = scmp.ne.s32.totalorder %s64, %s80
      %p82 = scmp.eq.s32.totalorder %s23, 0
      %p83 = por %p81, %p82
      %s84 = ssub.s32 %s25, %s32
      %p85 = scmp.eq.s32.totalorder %s84, 0
      %s87 = sadd.s32 %s86, 1
      %s88 = scalar_select %p85, %s86, %s87
      %p91 = pneg %p85
      %p92 = scmp.eq.s32.totalorder %s17, 1
      %p93 = por %p91, %p92
      %p94 = scmp.ne.s32.totalorder %s86, %s89
      %p95 = scmp.eq.s32.totalorder %s17, 0
      %p96 = por %p94, %p95
      %p97 = scmp.ne.s32.totalorder %s86, %s89
      %p98 = scmp.eq.s32.totalorder %s22, 1
      %p99 = por %p97, %p98
      %p100 = scmp.ne.s32.totalorder %s89, %s90
      %p101 = scmp.eq.s32.totalorder %s22, 0
      %p102 = por %p100, %p101
      %p103 = scmp.ne.s32.totalorder %s89, %s90
      %p104 = scmp.eq.s32.totalorder %s23, 1
      %p105 = por %p103, %p104
      %p107 = scmp.ne.s32.totalorder %s90, %s106
      %p108 = scmp.eq.s32.totalorder %s23, 0
      %p109 = por %p107, %p108
      %s110 = ssub.s32 %s25, %s32
      %p111 = scmp.eq.s32.totalorder %s110, 0
      %s113 = sadd.s32 %s112, 1
      %s114 = scalar_select %p111, %s112, %s113
      %p117 = pneg %p111
      %p118 = scmp.eq.s32.totalorder %s17, 1
      %p119 = por %p117, %p118
      %p120 = scmp.ne.s32.totalorder %s112, %s115
      %p121 = scmp.eq.s32.totalorder %s17, 0
      %p122 = por %p120, %p121
      %p123 = scmp.ne.s32.totalorder %s112, %s115
      %p124 = scmp.eq.s32.totalorder %s22, 1
      %p125 = por %p123, %p124
      %p126 = scmp.ne.s32.totalorder %s115, %s116
      %p127 = scmp.eq.s32.totalorder %s22, 0
      %p128 = por %p126, %p127
      %p129 = scmp.ne.s32.totalorder %s115, %s116
      %p130 = scmp.eq.s32.totalorder %s23, 1
      %p131 = por %p129, %p130
      %p133 = scmp.ne.s32.totalorder %s116, %s132
      %p134 = scmp.eq.s32.totalorder %s23, 0
      %p135 = por %p133, %p134
      %s136 = ssub.s32 %s25, %s32
      %s137 = ssub.s32 %s24, %s36
      %s138 = sor.u32 %s136, %s137
      %p139 = scmp.eq.s32.totalorder %s138, 0
      %s141 = sadd.s32 %s140, 1
      %s142 = scalar_select %p139, %s140, %s141
      %p145 = pneg %p139
      %p146 = scmp.eq.s32.totalorder %s17, 1
      %p147 = por %p145, %p146
      %p148 = scmp.ne.s32.totalorder %s140, %s143
      %p149 = scmp.eq.s32.totalorder %s17, 0
      %p150 = por %p148, %p149
      %p151 = scmp.ne.s32.totalorder %s140, %s143
      %p152 = scmp.eq.s32.totalorder %s22, 1
      %p153 = por %p151, %p152
      %p154 = scmp.ne.s32.totalorder %s143, %s144
      %p155 = scmp.eq.s32.totalorder %s22, 0
      %p156 = por %p154, %p155
      %p157 = scmp.ne.s32.totalorder %s143, %s144
      %p158 = scmp.eq.s32.totalorder %s23, 1
      %p159 = por %p157, %p158
      %p161 = scmp.ne.s32.totalorder %s144, %s160
      %p162 = scmp.eq.s32.totalorder %s23, 0
      %p163 = por %p161, %p162
      %s164 = ssub.s32 %s24, %s36
      %p165 = scmp.eq.s32.totalorder %s164, 0
      %s167 = sadd.s32 %s166, 1
      %s168 = scalar_select %p165, %s166, %s167
      %p171 = pneg %p165
      %p172 = scmp.eq.s32.totalorder %s17, 1
      %p173 = por %p171, %p172
      %p174 = scmp.ne.s32.totalorder %s166, %s169
      %p175 = scmp.eq.s32.totalorder %s17, 0
      %p176 = por %p174, %p175
      %p177 = scmp.ne.s32.totalorder %s166, %s169
      %p178 = scmp.eq.s32.totalorder %s22, 1
      %p179 = por %p177, %p178
      %p180 = scmp.ne.s32.totalorder %s169, %s170
      %p181 = scmp.eq.s32.totalorder %s22, 0
      %p182 = por %p180, %p181
      %p183 = scmp.ne.s32.totalorder %s169, %s170
      %p184 = scmp.eq.s32.totalorder %s23, 1
      %p185 = por %p183, %p184
      %p187 = scmp.ne.s32.totalorder %s170, %s186
      %p188 = scmp.eq.s32.totalorder %s23, 0
      %p189 = por %p187, %p188
      %s190 = ssub.s32 %s24, %s36
      %p191 = scmp.eq.s32.totalorder %s190, 0
      %s193 = sadd.s32 %s192, 1
      %s194 = scalar_select %p191, %s192, %s193
      %p197 = pneg %p191
      %p198 = scmp.eq.s32.totalorder %s17, 1
      %p199 = por %p197, %p198
      %p200 = scmp.ne.s32.totalorder %s192, %s195
      %p201 = scmp.eq.s32.totalorder %s17, 0
      %p202 = por %p200, %p201
      %p203 = scmp.ne.s32.totalorder %s192, %s195
      %p204 = scmp.eq.s32.totalorder %s22, 1
      %p205 = por %p203, %p204
      %p206 = scmp.ne.s32.totalorder %s195, %s196
      %p207 = scmp.eq.s32.totalorder %s22, 0
      %p208 = por %p206, %p207
      %p209 = scmp.ne.s32.totalorder %s195, %s196
      %p210 = scmp.eq.s32.totalorder %s23, 1
      %p211 = por %p209, %p210
      %p213 = scmp.ne.s32.totalorder %s196, %s212
      %p214 = scmp.eq.s32.totalorder %s23, 0
      %p215 = por %p213, %p214
      %p216 = scmp.le.s32.totalorder 1, %s17
      %p217 = scmp.lt.s32.totalorder %s17, 3
      %p218 = pnand %p216, %p217
      %p219 = pneg %p218
      // Predicated region
      $region9: #{tpu_custom_call.1} parent=5 // pred_check
        _
      $region10: #{tpu_custom_call.1} parent=5 // pred_check_branch
        %221 = sbr.rel (%p218) target = $region12
      $region11: #{tpu_custom_call.1} parent=5 // pred_region
        %s222 = ssub.s32 %s17, 1
        // Predicated region
        $region13: #{tpu_custom_call.1} parent=11 // pred_check
          %p223 = pneg %p50
        $region14: #{tpu_custom_call.1} parent=11 // pred_check_branch
          %225 = sbr.rel (%p223) target = $region16
        $region15: #{tpu_custom_call.1} parent=11 // pred_region
          %s227 = ssub.s32 4096, 4096
          %228 = vsyncadd [#allocation3], %s227
          %s229 = sshll.u32 [#allocation2], 4
          %s230 = int_to_ptr.vmem [resolvable:$true] %s229
          %235 = dma.hbm_to_vmem [thread:$0]  %s0, 4096, %s230, [#allocation3], 256, 256, 16
        $region16: #{tpu_custom_call.1} parent=11 // pred_fallthru
          _
        // Predicated region
        $region17: #{tpu_custom_call.1} parent=11 // pred_check
          %p236 = pneg %p182
        $region18: #{tpu_custom_call.1} parent=11 // pred_check_branch
          %238 = sbr.rel (%p236) target = $region20
        $region19: #{tpu_custom_call.1} parent=11 // pred_region
          %s239 = smul.u32 2, %s26
          %p240 = scmp.lt.s32.totalorder %s239, 1
          %s241 = scalar_select %p240, %s239, 1
          %s242 = scalar_lea.vmem %s5, %s241
          %s243 = smul.u32 2, %s26
        $region20: #{tpu_custom_call.1} parent=11 // pred_fallthru
          _
      $region12: #{tpu_custom_call.1} parent=5 // pred_fallthru
        _
      %p244 = scmp.lt.s32.totalorder %s17, 2
      // Predicated region
      $region21: #{tpu_custom_call.1} parent=5 // pred_check
        %p245 = pneg %p244
      $region22: #{tpu_custom_call.1} parent=5 // pred_check_branch
        %247 = sbr.rel (%p245) target = $region24
      $region23: #{tpu_custom_call.1} parent=5 // pred_region
        // Predicated region
        $region25: #{tpu_custom_call.1} parent=23 // pred_check
          %p248 = pneg %p70
        $region26: #{tpu_custom_call.1} parent=23 // pred_check_branch
          %250 = sbr.rel (%p248) target = $region28
        $region27: #{tpu_custom_call.1} parent=23 // pred_region
          %s251 = sand.u32 %s17, 1
          %s252 = scalar_lea.sflag [#allocation6], %s251
          %s253 = sand.u32 %s60, 1
          %s254 = smul.addr %s253, 128
          %s255 = scalar_lea.vmem [#allocation5], %s254
          %s257 = ssub.s32 2048, 2048
          %258 = vsyncadd %s252, %s257
          %s259 = smul.addr %s25, 64
          %s260 = scalar_lea.hbm %s1, %s259
          %s261 = sshll.u32 %s255, 4
          %s262 = int_to_ptr.vmem [resolvable:$true] %s261
          %267 = dma.hbm_to_vmem [thread:$0]  %s260, 2048, %s262, %s252, 128, 64, 4
        $region28: #{tpu_custom_call.1} parent=23 // pred_fallthru
          _
        // Predicated region
        $region29: #{tpu_custom_call.1} parent=23 // pred_check
          %p268 = pneg %p96
        $region30: #{tpu_custom_call.1} parent=23 // pred_check_branch
          %270 = sbr.rel (%p268) target = $region32
        $region31: #{tpu_custom_call.1} parent=23 // pred_region
          %p271 = scmp.lt.s32.totalorder %s25, 1
          %s272 = scalar_select %p271, %s25, 1
          %s273 = scalar_lea.vmem %s2, %s272
        $region32: #{tpu_custom_call.1} parent=23 // pred_fallthru
          _
        // Predicated region
        $region33: #{tpu_custom_call.1} parent=23 // pred_check
          %p274 = pneg %p122
        $region34: #{tpu_custom_call.1} parent=23 // pred_check_branch
          %276 = sbr.rel (%p274) target = $region36
        $region35: #{tpu_custom_call.1} parent=23 // pred_region
          %p277 = scmp.lt.s32.totalorder %s25, 1
          %s278 = scalar_select %p277, %s25, 1
          %s279 = scalar_lea.vmem %s3, %s278
        $region36: #{tpu_custom_call.1} parent=23 // pred_fallthru
          _
        // Predicated region
        $region37: #{tpu_custom_call.1} parent=23 // pred_check
          %p280 = pneg %p150
        $region38: #{tpu_custom_call.1} parent=23 // pred_check_branch
          %282 = sbr.rel (%p280) target = $region40
        $region39: #{tpu_custom_call.1} parent=23 // pred_region
          %s283 = sand.u32 %s17, 1
          %s284 = scalar_lea.sflag [#allocation6], %s283
          %s285 = sand.u32 %s140, 1
          %s286 = smul.addr %s285, 128
          %s287 = scalar_lea.vmem [#allocation7], %s286
          %s288 = smul.u32 16, %s25
          %s289 = smul.u32 2, %s24
          %s291 = ssub.s32 2048, 2048
          %292 = vsyncadd %s284, %s291
          %s293 = smul.addr %s288, 2
          %s294 = sadd.s32 %s289, %s293
          %s295 = smul.addr %s294, 64
          %s296 = scalar_lea.hbm %s4, %s295
          %s297 = sshll.u32 %s287, 4
          %s298 = int_to_ptr.vmem [resolvable:$true] %s297
          %303 = dma.hbm_to_vmem [thread:$0]  %s296, 2048, %s298, %s284, 128, 128, 8
        $region40: #{tpu_custom_call.1} parent=23 // pred_fallthru
          _
      $region24: #{tpu_custom_call.1} parent=5 // pred_fallthru
        _
      %p304 = scmp.le.s32.totalorder 1, %s17
      %p305 = scmp.lt.s32.totalorder %s17, 3
      %p306 = pnand %p304, %p305
      %p307 = pneg %p306
      // Predicated region
      $region41: #{tpu_custom_call.1} parent=5 // pred_check
        _
      $region42: #{tpu_custom_call.1} parent=5 // pred_check_branch
        %309 = sbr.rel (%p306) target = $region44
      $region43: #{tpu_custom_call.1} parent=5 // pred_region
        %s310 = ssub.s32 %s17, 1
        // Predicated region
        $region45: #{tpu_custom_call.1} parent=43 // pred_check
          %p311 = pneg %p50
        $region46: #{tpu_custom_call.1} parent=43 // pred_check_branch
          %313 = sbr.rel (%p311) target = $region48
        $region47: #{tpu_custom_call.1} parent=43 // pred_region
          %314 = dma.done [#allocation3], 4096
        $region48: #{tpu_custom_call.1} parent=43 // pred_fallthru
          _
        %s315 = sand.u32 %s22, 1
        %s316 = scalar_lea.sflag [#allocation6], %s315
        %s317 = sand.u32 %s63, 1
        %s318 = smul.addr %s317, 128
        %s319 = scalar_lea.vmem [#allocation5], %s318
        // Predicated region
        $region49: #{tpu_custom_call.1} parent=43 // pred_check
          %p320 = pneg %p76
        $region50: #{tpu_custom_call.1} parent=43 // pred_check_branch
          %322 = sbr.rel (%p320) target = $region52
        $region51: #{tpu_custom_call.1} parent=43 // pred_region
          %323 = dma.done %s316, 2048
        $region52: #{tpu_custom_call.1} parent=43 // pred_fallthru
          _
        %s324 = sand.u32 %s22, 1
        %s325 = scalar_lea.sflag [#allocation6], %s324
        %s326 = sand.u32 %s143, 1
        %s327 = smul.addr %s326, 128
        %s328 = scalar_lea.vmem [#allocation7], %s327
        // Predicated region
        $region53: #{tpu_custom_call.1} parent=43 // pred_check
          %p329 = pneg %p156
        $region54: #{tpu_custom_call.1} parent=43 // pred_check_branch
          %331 = sbr.rel (%p329) target = $region56
        $region55: #{tpu_custom_call.1} parent=43 // pred_region
          %332 = dma.done %s325, 2048
        $region56: #{tpu_custom_call.1} parent=43 // pred_fallthru
          _
        %p333 = pneg %p50
        %p334 = pneg %p47
        %s335 = sand.u32 %s22, 1
        %s336 = scalar_lea.sflag [#allocation6], %s335
        %s337 = sand.u32 %s63, 1
        %s338 = smul.addr %s337, 128
        %s339 = scalar_lea.vmem [#allocation5], %s338
        %p340 = pneg %p76
        %p341 = pneg %p73
        %p342 = scmp.lt.s32.totalorder %s27, 1
        %s343 = scalar_select %p342, %s27, 1
        %s344 = scalar_lea.vmem %s2, %s343
        %p345 = pneg %p102
        %p346 = pneg %p99
        %p347 = scmp.lt.s32.totalorder %s27, 1
        %s348 = scalar_select %p347, %s27, 1
        %s349 = scalar_lea.vmem %s3, %s348
        %p350 = pneg %p128
        %p351 = pneg %p125
        %s352 = sand.u32 %s22, 1
        %s353 = scalar_lea.sflag [#allocation6], %s352
        %s354 = sand.u32 %s143, 1
        %s355 = smul.addr %s354, 128
        %s356 = scalar_lea.vmem [#allocation7], %s355
        %p357 = pneg %p156
        %p358 = pneg %p153
        %s359 = smul.u32 2, %s26
        %p360 = scmp.lt.s32.totalorder %s359, 1
        %s361 = scalar_select %p360, %s359, 1
        %s362 = scalar_lea.vmem %s5, %s361
        %p363 = pneg %p182
        %p364 = pneg %p179
        %p365 = pneg %p208
        %p366 = pneg %p205
        %p367 = scmp.lt.s32.totalorder %s27, 1
        %s368 = scalar_select %p367, %s27, 1
        %s369 = scalar_lea.vmem %s2, %s368
        %p370 = scmp.lt.s32.totalorder %s27, 1
        %s371 = scalar_select %p370, %s27, 1
        %s372 = scalar_lea.vmem %s3, %s371
        %s373 = smul.u32 16, %s27
        %s374 = smul.u32 2, %s26
        %s375 = smul.u32 2, %s26
        %p376 = scmp.lt.s32.totalorder %s375, 1
        %s377 = scalar_select %p376, %s375, 1
        %s378 = scalar_lea.vmem %s5, %s377
        %s379 = smul.u32 2, %s26
        %s380 = smul.u32 2, %s26
        %v382 = vld [vmem:[#allocation2] sm:$0xff]
        %v383 = vld [vmem:[#allocation2 + $0x8] sm:$0xff]
        %v384 = vld [vmem:[#allocation2 + $0x10] sm:$0xff]
        %v385 = vld [vmem:[#allocation2 + $0x18] sm:$0xff]
        %v386 = vld [vmem:[#allocation2 + $0x20] sm:$0xff]
        %v387 = vld [vmem:[#allocation2 + $0x28] sm:$0xff]
        %v388 = vld [vmem:[#allocation2 + $0x30] sm:$0xff]
        %v389 = vld [vmem:[#allocation2 + $0x38] sm:$0xff]
        %v390 = vld [vmem:[#allocation2 + $0x40] sm:$0xff]
        %v391 = vld [vmem:[#allocation2 + $0x48] sm:$0xff]
        %v392 = vld [vmem:[#allocation2 + $0x50] sm:$0xff]
        %v393 = vld [vmem:[#allocation2 + $0x58] sm:$0xff]
        %v394 = vld [vmem:[#allocation2 + $0x60] sm:$0xff]
        %v395 = vld [vmem:[#allocation2 + $0x68] sm:$0xff]
        %v396 = vld [vmem:[#allocation2 + $0x70] sm:$0xff]
        %v397 = vld [vmem:[#allocation2 + $0x78] sm:$0xff]
        %v398 = vld [vmem:[#allocation2 + $0x80] sm:$0xff]
        %v399 = vld [vmem:[#allocation2 + $0x88] sm:$0xff]
        %v400 = vld [vmem:[#allocation2 + $0x90] sm:$0xff]
        %v401 = vld [vmem:[#allocation2 + $0x98] sm:$0xff]
        %v402 = vld [vmem:[#allocation2 + $0xa0] sm:$0xff]
        %v403 = vld [vmem:[#allocation2 + $0xa8] sm:$0xff]
        %v404 = vld [vmem:[#allocation2 + $0xb0] sm:$0xff]
        %v405 = vld [vmem:[#allocation2 + $0xb8] sm:$0xff]
        %v406 = vld [vmem:[#allocation2 + $0xc0] sm:$0xff]
        %v407 = vld [vmem:[#allocation2 + $0xc8] sm:$0xff]
        %v408 = vld [vmem:[#allocation2 + $0xd0] sm:$0xff]
        %v409 = vld [vmem:[#allocation2 + $0xd8] sm:$0xff]
        %v410 = vld [vmem:[#allocation2 + $0xe0] sm:$0xff]
        %v411 = vld [vmem:[#allocation2 + $0xe8] sm:$0xff]
        %v412 = vld [vmem:[#allocation2 + $0xf0] sm:$0xff]
        %v413 = vld [vmem:[#allocation2 + $0xf8] sm:$0xff]
        %v414 = vpack.c.bf16 %v384, %v382
        %v415 = vpack.c.bf16 %v385, %v383
        %v416 = vpack.c.bf16 %v388, %v386
        %v417 = vpack.c.bf16 %v389, %v387
        %v418 = vpack.c.bf16 %v392, %v390
        %v419 = vpack.c.bf16 %v393, %v391
        %v420 = vpack.c.bf16 %v396, %v394
        %v421 = vpack.c.bf16 %v397, %v395
        %v422 = vpack.c.bf16 %v400, %v398
        %v423 = vpack.c.bf16 %v401, %v399
        %v424 = vpack.c.bf16 %v404, %v402
        %v425 = vpack.c.bf16 %v405, %v403
        %v426 = vpack.c.bf16 %v408, %v406
        %v427 = vpack.c.bf16 %v409, %v407
        %v428 = vpack.c.bf16 %v412, %v410
        %v429 = vpack.c.bf16 %v413, %v411
        %v430 = vld [vmem:[%s319] sm:$0xf]
        %v431 = vld [vmem:[%s319 + $0x4] sm:$0xf]
        %v432 = vld [vmem:[%s319 + $0x8] sm:$0xf]
        %v433 = vld [vmem:[%s319 + $0xc] sm:$0xf]
        %v434 = vld [vmem:[%s319 + $0x10] sm:$0xf]
        %v435 = vld [vmem:[%s319 + $0x14] sm:$0xf]
        %v436 = vld [vmem:[%s319 + $0x18] sm:$0xf]
        %v437 = vld [vmem:[%s319 + $0x1c] sm:$0xf]
        %v438 = vld [vmem:[%s319 + $0x20] sm:$0xf]
        %v439 = vld [vmem:[%s319 + $0x24] sm:$0xf]
        %v440 = vld [vmem:[%s319 + $0x28] sm:$0xf]
        %v441 = vld [vmem:[%s319 + $0x2c] sm:$0xf]
        %v442 = vld [vmem:[%s319 + $0x30] sm:$0xf]
        %v443 = vld [vmem:[%s319 + $0x34] sm:$0xf]
        %v444 = vld [vmem:[%s319 + $0x38] sm:$0xf]
        %v445 = vld [vmem:[%s319 + $0x3c] sm:$0xf]
        %v446 = vld [vmem:[%s319 + $0x40] sm:$0xf]
        %v447 = vld [vmem:[%s319 + $0x44] sm:$0xf]
        %v448 = vld [vmem:[%s319 + $0x48] sm:$0xf]
        %v449 = vld [vmem:[%s319 + $0x4c] sm:$0xf]
        %v450 = vld [vmem:[%s319 + $0x50] sm:$0xf]
        %v451 = vld [vmem:[%s319 + $0x54] sm:$0xf]
        %v452 = vld [vmem:[%s319 + $0x58] sm:$0xf]
        %v453 = vld [vmem:[%s319 + $0x5c] sm:$0xf]
        %v454 = vld [vmem:[%s319 + $0x60] sm:$0xf]
        %v455 = vld [vmem:[%s319 + $0x64] sm:$0xf]
        %v456 = vld [vmem:[%s319 + $0x68] sm:$0xf]
        %v457 = vld [vmem:[%s319 + $0x6c] sm:$0xf]
        %v458 = vld [vmem:[%s319 + $0x70] sm:$0xf]
        %v459 = vld [vmem:[%s319 + $0x74] sm:$0xf]
        %v460 = vld [vmem:[%s319 + $0x78] sm:$0xf]
        %v461 = vld [vmem:[%s319 + $0x7c] sm:$0xf]
        %v494 = vunpack.c.l.b16 %v430
        %v495 = vunpack.c.l.b16 %v431
        %v496 = vunpack.c.l.b16 %v432
        %v497 = vunpack.c.l.b16 %v433
        %v498 = vunpack.c.l.b16 %v434
        %v499 = vunpack.c.l.b16 %v435
        %v500 = vunpack.c.l.b16 %v436
        %v501 = vunpack.c.l.b16 %v437
        %v502 = vunpack.c.l.b16 %v438
        %v503 = vunpack.c.l.b16 %v439
        %v504 = vunpack.c.l.b16 %v440
        %v505 = vunpack.c.l.b16 %v441
        %v506 = vunpack.c.l.b16 %v442
        %v507 = vunpack.c.l.b16 %v443
        %v508 = vunpack.c.l.b16 %v444
        %v509 = vunpack.c.l.b16 %v445
        %v510 = vunpack.c.l.b16 %v446
        %v511 = vunpack.c.l.b16 %v447
        %v512 = vunpack.c.l.b16 %v448
        %v513 = vunpack.c.l.b16 %v449
        %v514 = vunpack.c.l.b16 %v450
        %v515 = vunpack.c.l.b16 %v451
        %v516 = vunpack.c.l.b16 %v452
        %v517 = vunpack.c.l.b16 %v453
        %v518 = vunpack.c.l.b16 %v454
        %v519 = vunpack.c.l.b16 %v455
        %v520 = vunpack.c.l.b16 %v456
        %v521 = vunpack.c.l.b16 %v457
        %v522 = vunpack.c.l.b16 %v458
        %v523 = vunpack.c.l.b16 %v459
        %v524 = vunpack.c.l.b16 %v460
        %v525 = vunpack.c.l.b16 %v461
        %v526 = vpack.c.b16 %v495, %v494
        %v527 = vpack.c.b16 %v497, %v496
        %v528 = vpack.c.b16 %v499, %v498
        %v529 = vpack.c.b16 %v501, %v500
        %v530 = vpack.c.b16 %v503, %v502
        %v531 = vpack.c.b16 %v505, %v504
        %v532 = vpack.c.b16 %v507, %v506
        %v533 = vpack.c.b16 %v509, %v508
        %v534 = vpack.c.b16 %v511, %v510
        %v535 = vpack.c.b16 %v513, %v512
        %v536 = vpack.c.b16 %v515, %v514
        %v537 = vpack.c.b16 %v517, %v516
        %v538 = vpack.c.b16 %v519, %v518
        %v539 = vpack.c.b16 %v521, %v520
        %v540 = vpack.c.b16 %v523, %v522
        %v541 = vpack.c.b16 %v525, %v524
        %558 = vmatprep.subr.bf16.mxu0 0
        %559 = vmatpush1.bf16.msra.mxu0 %v526
        %560 = vmatprep.subr.bf16.mxu0 0
        %561 = vmatpush1.bf16.msra.mxu0 %v527
        %562 = vmatprep.subr.bf16.mxu0 0
        %563 = vmatpush1.bf16.msra.mxu0 %v528
        %564 = vmatprep.subr.bf16.mxu0 0
        %565 = vmatpush1.bf16.msra.mxu0 %v529
        %566 = vmatprep.subr.bf16.mxu0 0
        %567 = vmatpush1.bf16.msra.mxu0 %v530
        %568 = vmatprep.subr.bf16.mxu0 0
        %569 = vmatpush1.bf16.msra.mxu0 %v531
        %570 = vmatprep.subr.bf16.mxu0 0
        %571 = vmatpush1.bf16.msra.mxu0 %v532
        %572 = vmatprep.subr.bf16.mxu0 0
        %573 = vmatpush1.bf16.msra.mxu0 %v533
        %574 = vmatprep.subr.bf16.mxu0 0
        %575 = vmatpush1.bf16.msra.mxu0 %v534
        %576 = vmatprep.subr.bf16.mxu0 0
        %577 = vmatpush1.bf16.msra.mxu0 %v535
        %578 = vmatprep.subr.bf16.mxu0 0
        %579 = vmatpush1.bf16.msra.mxu0 %v536
        %580 = vmatprep.subr.bf16.mxu0 0
        %581 = vmatpush1.bf16.msra.mxu0 %v537
        %582 = vmatprep.subr.bf16.mxu0 0
        %583 = vmatpush1.bf16.msra.mxu0 %v538
        %584 = vmatprep.subr.bf16.mxu0 0
        %585 = vmatpush1.bf16.msra.mxu0 %v539
        %586 = vmatprep.subr.bf16.mxu0 0
        %587 = vmatpush1.bf16.msra.mxu0 %v540
        %588 = vmatprep.subr.bf16.mxu0 0
        %589 = vmatpush1.bf16.msra.mxu0 %v541
        %590 = vmatprep.mubr.bf16.mxu0 %v415
        %591 = vmatmul.mubr.bf16.gmra.mrb[0].mxu0 %v414
        %v592 = vpop.f32.mrb[0].mxu0
        %v593 = vadd.f32 0.0, %v592
        %v594 = vpop.f32.mrb[0].mxu0
        %v595 = vpop.f32.mrb[0].mxu0
        %v596 = vadd.f32 0.0, %v595
        %v597 = vpop.f32.mrb[0].mxu0
        %598 = vmatprep.mubr.bf16.mxu0 %v417
        %599 = vmatmul.mubr.bf16.gmra.mrb[0].mxu0 %v416
        %v600 = vpop.f32.mrb[0].mxu0
        %v601 = vadd.f32 0.0, %v600
        %v602 = vpop.f32.mrb[0].mxu0
        %v603 = vpop.f32.mrb[0].mxu0
        %v604 = vadd.f32 0.0, %v603
        %v605 = vpop.f32.mrb[0].mxu0
        %606 = vmatprep.mubr.bf16.mxu0 %v419
        %607 = vmatmul.mubr.bf16.gmra.mrb[0].mxu0 %v418
        %v608 = vpop.f32.mrb[0].mxu0
        %v609 = vadd.f32 0.0, %v608
        %v610 = vpop.f32.mrb[0].mxu0
        %v611 = vpop.f32.mrb[0].mxu0
        %v612 = vadd.f32 0.0, %v611
        %v613 = vpop.f32.mrb[0].mxu0
        %614 = vmatprep.mubr.bf16.mxu0 %v421
        %615 = vmatmul.mubr.bf16.gmra.mrb[0].mxu0 %v420
        %v616 = vpop.f32.mrb[0].mxu0
        %v617 = vadd.f32 0.0, %v616
        %v618 = vpop.f32.mrb[0].mxu0
        %v619 = vpop.f32.mrb[0].mxu0
        %v620 = vadd.f32 0.0, %v619
        %v621 = vpop.f32.mrb[0].mxu0
        %622 = vmatprep.mubr.bf16.mxu0 %v423
        %623 = vmatmul.mubr.bf16.gmra.mrb[0].mxu0 %v422
        %v624 = vpop.f32.mrb[0].mxu0
        %v625 = vadd.f32 0.0, %v624
        %v626 = vpop.f32.mrb[0].mxu0
        %v627 = vpop.f32.mrb[0].mxu0
        %v628 = vadd.f32 0.0, %v627
        %v629 = vpop.f32.mrb[0].mxu0
        %630 = vmatprep.mubr.bf16.mxu0 %v425
        %631 = vmatmul.mubr.bf16.gmra.mrb[0].mxu0 %v424
        %v632 = vpop.f32.mrb[0].mxu0
        %v633 = vadd.f32 0.0, %v632
        %v634 = vpop.f32.mrb[0].mxu0
        %v635 = vpop.f32.mrb[0].mxu0
        %v636 = vadd.f32 0.0, %v635
        %v637 = vpop.f32.mrb[0].mxu0
        %638 = vmatprep.mubr.bf16.mxu0 %v427
        %639 = vmatmul.mubr.bf16.gmra.mrb[0].mxu0 %v426
        %v640 = vpop.f32.mrb[0].mxu0
        %v641 = vadd.f32 0.0, %v640
        %v642 = vpop.f32.mrb[0].mxu0
        %v643 = vpop.f32.mrb[0].mxu0
        %v644 = vadd.f32 0.0, %v643
        %v645 = vpop.f32.mrb[0].mxu0
        %646 = vmatprep.mubr.bf16.mxu0 %v429
        %647 = vmatmul.mubr.bf16.gmra.mrb[0].mxu0 %v428
        %v648 = vpop.f32.mrb[0].mxu0
        %v649 = vadd.f32 0.0, %v648
        %v650 = vpop.f32.mrb[0].mxu0
        %v651 = vpop.f32.mrb[0].mxu0
        %v652 = vadd.f32 0.0, %v651
        %v653 = vpop.f32.mrb[0].mxu0
        %654 = vdwg.mxu0
        %v655 = vadd.f32 %v593, %v596
        %v656 = vadd.f32 %v655, %v601
        %v657 = vadd.f32 %v656, %v604
        %v658 = vadd.f32 %v657, %v609
        %v659 = vadd.f32 %v658, %v612
        %v660 = vadd.f32 %v659, %v617
        %v661 = vadd.f32 %v660, %v620
        %v662 = vadd.f32 %v661, %v625
        %v663 = vadd.f32 %v662, %v628
        %v664 = vadd.f32 %v663, %v633
        %v665 = vadd.f32 %v664, %v636
        %v666 = vadd.f32 %v665, %v641
        %v667 = vadd.f32 %v666, %v644
        %v668 = vadd.f32 %v667, %v649
        %v669 = vadd.f32 %v668, %v652
        %v670 = vrot.slane %v669, 4
        %v671 = vadd.f32 %v669, %v670
        %v672 = vrot.slane %v671, 2
        %v673 = vadd.f32 %v671, %v672
        %v674 = vrot.slane %v673, 1
        %v675 = vadd.f32 %v673, %v674
        %v676 = vrcp.pop 128.0
        %v677 = vmul.f32 %v675, %v676
        %v678 = vsub.f32 %v593, %v677
        %v679 = vsub.f32 %v596, %v677
        %v680 = vsub.f32 %v601, %v677
        %v681 = vsub.f32 %v604, %v677
        %v682 = vsub.f32 %v609, %v677
        %v683 = vsub.f32 %v612, %v677
        %v684 = vsub.f32 %v617, %v677
        %v685 = vsub.f32 %v620, %v677
        %v686 = vsub.f32 %v625, %v677
        %v687 = vsub.f32 %v628, %v677
        %v688 = vsub.f32 %v633, %v677
        %v689 = vsub.f32 %v636, %v677
        %v690 = vsub.f32 %v641, %v677
        %v691 = vsub.f32 %v644, %v677
        %v692 = vsub.f32 %v649, %v677
        %v693 = vsub.f32 %v652, %v677
        %v694 = vmul.f32 %v678, %v678
        %v695 = vmul.f32 %v679, %v679
        %v696 = vmul.f32 %v680, %v680
        %v697 = vmul.f32 %v681, %v681
        %v698 = vmul.f32 %v682, %v682
        %v699 = vmul.f32 %v683, %v683
        %v700 = vmul.f32 %v684, %v684
        %v701 = vmul.f32 %v685, %v685
        %v702 = vmul.f32 %v686, %v686
        %v703 = vmul.f32 %v687, %v687
        %v704 = vmul.f32 %v688, %v688
        %v705 = vmul.f32 %v689, %v689
        %v706 = vmul.f32 %v690, %v690
        %v707 = vmul.f32 %v691, %v691
        %v708 = vmul.f32 %v692, %v692
        %v709 = vmul.f32 %v693, %v693
        %v710 = vadd.f32 %v694, %v695
        %v711 = vadd.f32 %v710, %v696
        %v712 = vadd.f32 %v711, %v697
        %v713 = vadd.f32 %v712, %v698
        %v714 = vadd.f32 %v713, %v699
        %v715 = vadd.f32 %v714, %v700
        %v716 = vadd.f32 %v715, %v701
        %v717 = vadd.f32 %v716, %v702
        %v718 = vadd.f32 %v717, %v703
        %v719 = vadd.f32 %v718, %v704
        %v720 = vadd.f32 %v719, %v705
        %v721 = vadd.f32 %v720, %v706
        %v722 = vadd.f32 %v721, %v707
        %v723 = vadd.f32 %v722, %v708
        %v724 = vadd.f32 %v723, %v709
        %v725 = vrot.slane %v724, 4
        %v726 = vadd.f32 %v724, %v725
        %v727 = vrot.slane %v726, 2
        %v728 = vadd.f32 %v726, %v727
        %v729 = vrot.slane %v728, 1
        %v730 = vadd.f32 %v728, %v729
        %v731 = vmul.f32 %v730, %v676
        %v732 = vld [vmem:[%s369] sm:$0x1]
        %v733 = vadd.f32 %v731, 1e-05
        %v734 = vrsqrt.pop %v733
        %v735 = vmul.f32 %v732, %v734
        %v737 = vlaneseq
        %v738 = vshrl.u32 %v737, 7
        %v739 = vsub.s32 0, %v738
        %v740 = vrot.slane %v735, %v739
        %v742 = vmul.f32 %v678, %v740
        %v743 = vmul.f32 %v679, %v740
        %v744 = vmul.f32 %v680, %v740
        %v745 = vmul.f32 %v681, %v740
        %v746 = vmul.f32 %v682, %v740
        %v747 = vmul.f32 %v683, %v740
        %v748 = vmul.f32 %v684, %v740
        %v749 = vmul.f32 %v685, %v740
        %v750 = vmul.f32 %v686, %v740
        %v751 = vmul.f32 %v687, %v740
        %v752 = vmul.f32 %v688, %v740
        %v753 = vmul.f32 %v689, %v740
        %v754 = vmul.f32 %v690, %v740
        %v755 = vmul.f32 %v691, %v740
        %v756 = vmul.f32 %v692, %v740
        %v757 = vmul.f32 %v693, %v740
        %v758 = vld [vmem:[%s372] sm:$0x1]
        %v760 = vlaneseq
        %v761 = vshrl.u32 %v760, 7
        %v762 = vsub.s32 0, %v761
        %v763 = vrot.slane %v758, %v762
        %v765 = vadd.f32 %v742, %v763
        %v766 = vadd.f32 %v743, %v763
        %v767 = vadd.f32 %v744, %v763
        %v768 = vadd.f32 %v745, %v763
        %v769 = vadd.f32 %v746, %v763
        %v770 = vadd.f32 %v747, %v763
        %v771 = vadd.f32 %v748, %v763
        %v772 = vadd.f32 %v749, %v763
        %v773 = vadd.f32 %v750, %v763
        %v774 = vadd.f32 %v751, %v763
        %v775 = vadd.f32 %v752, %v763
        %v776 = vadd.f32 %v753, %v763
        %v777 = vadd.f32 %v754, %v763
        %v778 = vadd.f32 %v755, %v763
        %v779 = vadd.f32 %v756, %v763
        %v780 = vadd.f32 %v757, %v763
        %v781 = vmax.f32 %v765, 0.0
        %v782 = vmax.f32 %v766, 0.0
        %v783 = vmax.f32 %v767, 0.0
        %v784 = vmax.f32 %v768, 0.0
        %v785 = vmax.f32 %v769, 0.0
        %v786 = vmax.f32 %v770, 0.0
        %v787 = vmax.f32 %v771, 0.0
        %v788 = vmax.f32 %v772, 0.0
        %v789 = vmax.f32 %v773, 0.0
        %v790 = vmax.f32 %v774, 0.0
        %v791 = vmax.f32 %v775, 0.0
        %v792 = vmax.f32 %v776, 0.0
        %v793 = vmax.f32 %v777, 0.0
        %v794 = vmax.f32 %v778, 0.0
        %v795 = vmax.f32 %v779, 0.0
        %v796 = vmax.f32 %v780, 0.0
        %v797 = vpack.c.bf16 %v782, %v781
        %v798 = vpack.c.bf16 %v784, %v783
        %v799 = vpack.c.bf16 %v786, %v785
        %v800 = vpack.c.bf16 %v788, %v787
        %v801 = vpack.c.bf16 %v790, %v789
        %v802 = vpack.c.bf16 %v792, %v791
        %v803 = vpack.c.bf16 %v794, %v793
        %v804 = vpack.c.bf16 %v796, %v795
        %v805 = vld [vmem:[%s328] sm:$0xff]
        %v806 = vld [vmem:[%s328 + $0x8] sm:$0xff]
        %v807 = vld [vmem:[%s328 + $0x10] sm:$0xff]
        %v808 = vld [vmem:[%s328 + $0x18] sm:$0xff]
        %v809 = vld [vmem:[%s328 + $0x20] sm:$0xff]
        %v810 = vld [vmem:[%s328 + $0x28] sm:$0xff]
        %v811 = vld [vmem:[%s328 + $0x30] sm:$0xff]
        %v812 = vld [vmem:[%s328 + $0x38] sm:$0xff]
        %v813 = vld [vmem:[%s328 + $0x40] sm:$0xff]
        %v814 = vld [vmem:[%s328 + $0x48] sm:$0xff]
        %v815 = vld [vmem:[%s328 + $0x50] sm:$0xff]
        %v816 = vld [vmem:[%s328 + $0x58] sm:$0xff]
        %v817 = vld [vmem:[%s328 + $0x60] sm:$0xff]
        %v818 = vld [vmem:[%s328 + $0x68] sm:$0xff]
        %v819 = vld [vmem:[%s328 + $0x70] sm:$0xff]
        %v820 = vld [vmem:[%s328 + $0x78] sm:$0xff]
        %v837 = vunpack.c.l.b16 %v805
        %v838 = vunpack.c.h.b16 %v805
        %v839 = vunpack.c.l.b16 %v806
        %v840 = vunpack.c.h.b16 %v806
        %v841 = vunpack.c.l.b16 %v807
        %v842 = vunpack.c.h.b16 %v807
        %v843 = vunpack.c.l.b16 %v808
        %v844 = vunpack.c.h.b16 %v808
        %v845 = vunpack.c.l.b16 %v809
        %v846 = vunpack.c.h.b16 %v809
        %v847 = vunpack.c.l.b16 %v810
        %v848 = vunpack.c.h.b16 %v810
        %v849 = vunpack.c.l.b16 %v811
        %v850 = vunpack.c.h.b16 %v811
        %v851 = vunpack.c.l.b16 %v812
        %v852 = vunpack.c.h.b16 %v812
        %v853 = vunpack.c.l.b16 %v813
        %v854 = vunpack.c.h.b16 %v813
        %v855 = vunpack.c.l.b16 %v814
        %v856 = vunpack.c.h.b16 %v814
        %v857 = vunpack.c.l.b16 %v815
        %v858 = vunpack.c.h.b16 %v815
        %v859 = vunpack.c.l.b16 %v816
        %v860 = vunpack.c.h.b16 %v816
        %v861 = vunpack.c.l.b16 %v817
        %v862 = vunpack.c.h.b16 %v817
        %v863 = vunpack.c.l.b16 %v818
        %v864 = vunpack.c.h.b16 %v818
        %v865 = vunpack.c.l.b16 %v819
        %v866 = vunpack.c.h.b16 %v819
        %v867 = vunpack.c.l.b16 %v820
        %v868 = vunpack.c.h.b16 %v820
        %v869 = vpack.c.b16 %v839, %v837
        %v870 = vpack.c.b16 %v840, %v838
        %v871 = vpack.c.b16 %v843, %v841
        %v872 = vpack.c.b16 %v844, %v842
        %v873 = vpack.c.b16 %v847, %v845
        %v874 = vpack.c.b16 %v848, %v846
        %v875 = vpack.c.b16 %v851, %v849
        %v876 = vpack.c.b16 %v852, %v850
        %v877 = vpack.c.b16 %v855, %v853
        %v878 = vpack.c.b16 %v856, %v854
        %v879 = vpack.c.b16 %v859, %v857
        %v880 = vpack.c.b16 %v860, %v858
        %v881 = vpack.c.b16 %v863, %v861
        %v882 = vpack.c.b16 %v864, %v862
        %v883 = vpack.c.b16 %v867, %v865
        %v884 = vpack.c.b16 %v868, %v866
        %901 = vmatprep.subr.bf16.mxu0 %v870
        %902 = vmatpush1.bf16.msra.mxu0 %v869
        %903 = vmatprep.subr.bf16.mxu0 %v872
        %904 = vmatpush1.bf16.msra.mxu0 %v871
        %905 = vmatprep.subr.bf16.mxu0 %v874
        %906 = vmatpush1.bf16.msra.mxu0 %v873
        %907 = vmatprep.subr.bf16.mxu0 %v876
        %908 = vmatpush1.bf16.msra.mxu0 %v875
        %909 = vmatprep.subr.bf16.mxu0 %v878
        %910 = vmatpush1.bf16.msra.mxu0 %v877
        %911 = vmatprep.subr.bf16.mxu0 %v880
        %912 = vmatpush1.bf16.msra.mxu0 %v879
        %913 = vmatprep.subr.bf16.mxu0 %v882
        %914 = vmatpush1.bf16.msra.mxu0 %v881
        %915 = vmatprep.subr.bf16.mxu0 %v884
        %916 = vmatpush1.bf16.msra.mxu0 %v883
        %917 = vmatprep.subr.bf16.mxu0 0
        %918 = vmatpush1.bf16.msra.mxu0 0
        %919 = vmatprep.subr.bf16.mxu0 0
        %920 = vmatpush1.bf16.msra.mxu0 0
        %921 = vmatprep.subr.bf16.mxu0 0
        %922 = vmatpush1.bf16.msra.mxu0 0
        %923 = vmatprep.subr.bf16.mxu0 0
        %924 = vmatpush1.bf16.msra.mxu0 0
        %925 = vmatprep.subr.bf16.mxu0 0
        %926 = vmatpush1.bf16.msra.mxu0 0
        %927 = vmatprep.subr.bf16.mxu0 0
        %928 = vmatpush1.bf16.msra.mxu0 0
        %929 = vmatprep.subr.bf16.mxu0 0
        %930 = vmatpush1.bf16.msra.mxu0 0
        %931 = vmatprep.subr.bf16.mxu0 0
        %932 = vmatpush1.bf16.msra.mxu0 0
        %933 = vmatprep.mubr.bf16.mxu0 0
        %934 = vmatmul.mubr.bf16.gmra.mrb[0].mxu0 %v797
        %v935 = vpop.f32.mrb[0].mxu0
        %v936 = vadd.f32 0.0, %v935
        %v937 = vpop.f32.mrb[0].mxu0
        %v938 = vadd.f32 0.0, %v937
        %v939 = vpop.f32.mrb[0].mxu0
        %v940 = vadd.f32 0.0, %v939
        %v941 = vpop.f32.mrb[0].mxu0
        %v942 = vadd.f32 0.0, %v941
        %943 = vmatprep.mubr.bf16.mxu0 0
        %944 = vmatmul.mubr.bf16.gmra.mrb[0].mxu0 %v798
        %v945 = vpop.f32.mrb[0].mxu0
        %v946 = vadd.f32 0.0, %v945
        %v947 = vpop.f32.mrb[0].mxu0
        %v948 = vadd.f32 0.0, %v947
        %v949 = vpop.f32.mrb[0].mxu0
        %v950 = vadd.f32 0.0, %v949
        %v951 = vpop.f32.mrb[0].mxu0
        %v952 = vadd.f32 0.0, %v951
        %953 = vmatprep.mubr.bf16.mxu0 0
        %954 = vmatmul.mubr.bf16.gmra.mrb[0].mxu0 %v799
        %v955 = vpop.f32.mrb[0].mxu0
        %v956 = vadd.f32 0.0, %v955
        %v957 = vpop.f32.mrb[0].mxu0
        %v958 = vadd.f32 0.0, %v957
        %v959 = vpop.f32.mrb[0].mxu0
        %v960 = vadd.f32 0.0, %v959
        %v961 = vpop.f32.mrb[0].mxu0
        %v962 = vadd.f32 0.0, %v961
        %963 = vmatprep.mubr.bf16.mxu0 0
        %964 = vmatmul.mubr.bf16.gmra.mrb[0].mxu0 %v800
        %v965 = vpop.f32.mrb[0].mxu0
        %v966 = vadd.f32 0.0, %v965
        %v967 = vpop.f32.mrb[0].mxu0
        %v968 = vadd.f32 0.0, %v967
        %v969 = vpop.f32.mrb[0].mxu0
        %v970 = vadd.f32 0.0, %v969
        %v971 = vpop.f32.mrb[0].mxu0
        %v972 = vadd.f32 0.0, %v971
        %973 = vmatprep.mubr.bf16.mxu0 0
        %974 = vmatmul.mubr.bf16.gmra.mrb[0].mxu0 %v801
        %v975 = vpop.f32.mrb[0].mxu0
        %v976 = vadd.f32 0.0, %v975
        %v977 = vpop.f32.mrb[0].mxu0
        %v978 = vadd.f32 0.0, %v977
        %v979 = vpop.f32.mrb[0].mxu0
        %v980 = vadd.f32 0.0, %v979
        %v981 = vpop.f32.mrb[0].mxu0
        %v982 = vadd.f32 0.0, %v981
        %983 = vmatprep.mubr.bf16.mxu0 0
        %984 = vmatmul.mubr.bf16.gmra.mrb[0].mxu0 %v802
        %v985 = vpop.f32.mrb[0].mxu0
        %v986 = vadd.f32 0.0, %v985
        %v987 = vpop.f32.mrb[0].mxu0
        %v988 = vadd.f32 0.0, %v987
        %v989 = vpop.f32.mrb[0].mxu0
        %v990 = vadd.f32 0.0, %v989
        %v991 = vpop.f32.mrb[0].mxu0
        %v992 = vadd.f32 0.0, %v991
        %993 = vmatprep.mubr.bf16.mxu0 0
        %994 = vmatmul.mubr.bf16.gmra.mrb[0].mxu0 %v803
        %v995 = vpop.f32.mrb[0].mxu0
        %v996 = vadd.f32 0.0, %v995
        %v997 = vpop.f32.mrb[0].mxu0
        %v998 = vadd.f32 0.0, %v997
        %v999 = vpop.f32.mrb[0].mxu0
        %v1000 = vadd.f32 0.0, %v999
        %v1001 = vpop.f32.mrb[0].mxu0
        %v1002 = vadd.f32 0.0, %v1001
        %1003 = vmatprep.mubr.bf16.mxu0 0
        %1004 = vmatmul.mubr.bf16.gmra.mrb[0].mxu0 %v804
        %v1005 = vpop.f32.mrb[0].mxu0
        %v1006 = vadd.f32 0.0, %v1005
        %v1007 = vpop.f32.mrb[0].mxu0
        %v1008 = vadd.f32 0.0, %v1007
        %v1009 = vpop.f32.mrb[0].mxu0
        %v1010 = vadd.f32 0.0, %v1009
        %v1011 = vpop.f32.mrb[0].mxu0
        %v1012 = vadd.f32 0.0, %v1011
        %1013 = vdwg.mxu0
        %p1014 = scmp.eq.s32.totalorder %s27, 0
        // Predicated region
        $region57: #{tpu_custom_call.1} parent=43 // pred_check
          %p1015 = pneg %p1014
        $region58: #{tpu_custom_call.1} parent=43 // pred_check_branch
          %1017 = sbr.rel (%p1015) target = $region60
        $region59: #{tpu_custom_call.1} parent=43 // pred_region
          %v1018 = vld [vmem:[%s378] sm:$0x3]
          %v1020 = vlaneseq
          %v1021 = vshrl.u32 %v1020, 7
          %v1022 = vsub.s32 0, %v1021
          %v1023 = vrot.slane %v1018, %v1022
          %v1024 = vlaneseq
          %v1025 = vshrl.u32 %v1024, 7
          %v1026 = vsub.s32 1, %v1025
          %v1027 = vrot.slane %v1018, %v1026
          %v1030 = vadd.f32 %v936, %v1023
          %v1031 = vadd.f32 %v938, %v1027
          %v1032 = vadd.f32 %v940, %v1023
          %v1033 = vadd.f32 %v942, %v1027
          %v1034 = vadd.f32 %v946, %v1023
          %v1035 = vadd.f32 %v948, %v1027
          %v1036 = vadd.f32 %v950, %v1023
          %v1037 = vadd.f32 %v952, %v1027
          %v1038 = vadd.f32 %v956, %v1023
          %v1039 = vadd.f32 %v958, %v1027
          %v1040 = vadd.f32 %v960, %v1023
          %v1041 = vadd.f32 %v962, %v1027
          %v1042 = vadd.f32 %v966, %v1023
          %v1043 = vadd.f32 %v968, %v1027
          %v1044 = vadd.f32 %v970, %v1023
          %v1045 = vadd.f32 %v972, %v1027
          %v1046 = vadd.f32 %v976, %v1023
          %v1047 = vadd.f32 %v978, %v1027
          %v1048 = vadd.f32 %v980, %v1023
          %v1049 = vadd.f32 %v982, %v1027
          %v1050 = vadd.f32 %v986, %v1023
          %v1051 = vadd.f32 %v988, %v1027
          %v1052 = vadd.f32 %v990, %v1023
          %v1053 = vadd.f32 %v992, %v1027
          %v1054 = vadd.f32 %v996, %v1023
          %v1055 = vadd.f32 %v998, %v1027
          %v1056 = vadd.f32 %v1000, %v1023
          %v1057 = vadd.f32 %v1002, %v1027
          %v1058 = vadd.f32 %v1006, %v1023
          %v1059 = vadd.f32 %v1008, %v1027
          %v1060 = vadd.f32 %v1010, %v1023
          %v1061 = vadd.f32 %v1012, %v1027
          %1062 = vst [vmem:[#allocation8] sm:$0xff] %v1030
          %1063 = vst [vmem:[#allocation8 + $0x8] sm:$0xff] %v1031
          %1064 = vst [vmem:[#allocation8 + $0x10] sm:$0xff] %v1032
          %1065 = vst [vmem:[#allocation8 + $0x18] sm:$0xff] %v1033
          %1066 = vst [vmem:[#allocation8 + $0x20] sm:$0xff] %v1034
          %1067 = vst [vmem:[#allocation8 + $0x28] sm:$0xff] %v1035
          %1068 = vst [vmem:[#allocation8 + $0x30] sm:$0xff] %v1036
          %1069 = vst [vmem:[#allocation8 + $0x38] sm:$0xff] %v1037
          %1070 = vst [vmem:[#allocation8 + $0x40] sm:$0xff] %v1038
          %1071 = vst [vmem:[#allocation8 + $0x48] sm:$0xff] %v1039
          %1072 = vst [vmem:[#allocation8 + $0x50] sm:$0xff] %v1040
          %1073 = vst [vmem:[#allocation8 + $0x58] sm:$0xff] %v1041
          %1074 = vst [vmem:[#allocation8 + $0x60] sm:$0xff] %v1042
          %1075 = vst [vmem:[#allocation8 + $0x68] sm:$0xff] %v1043
          %1076 = vst [vmem:[#allocation8 + $0x70] sm:$0xff] %v1044
          %1077 = vst [vmem:[#allocation8 + $0x78] sm:$0xff] %v1045
          %1078 = vst [vmem:[#allocation8 + $0x80] sm:$0xff] %v1046
          %1079 = vst [vmem:[#allocation8 + $0x88] sm:$0xff] %v1047
          %1080 = vst [vmem:[#allocation8 + $0x90] sm:$0xff] %v1048
          %1081 = vst [vmem:[#allocation8 + $0x98] sm:$0xff] %v1049
          %1082 = vst [vmem:[#allocation8 + $0xa0] sm:$0xff] %v1050
          %1083 = vst [vmem:[#allocation8 + $0xa8] sm:$0xff] %v1051
          %1084 = vst [vmem:[#allocation8 + $0xb0] sm:$0xff] %v1052
          %1085 = vst [vmem:[#allocation8 + $0xb8] sm:$0xff] %v1053
          %1086 = vst [vmem:[#allocation8 + $0xc0] sm:$0xff] %v1054
          %1087 = vst [vmem:[#allocation8 + $0xc8] sm:$0xff] %v1055
          %1088 = vst [vmem:[#allocation8 + $0xd0] sm:$0xff] %v1056
          %1089 = vst [vmem:[#allocation8 + $0xd8] sm:$0xff] %v1057
          %1090 = vst [vmem:[#allocation8 + $0xe0] sm:$0xff] %v1058
          %1091 = vst [vmem:[#allocation8 + $0xe8] sm:$0xff] %v1059
          %1092 = vst [vmem:[#allocation8 + $0xf0] sm:$0xff] %v1060
          %1093 = vst [vmem:[#allocation8 + $0xf8] sm:$0xff] %v1061
        $region60: #{tpu_custom_call.1} parent=43 // pred_fallthru
          _
        %p1094 = scmp.gt.s32.totalorder %s27, 0
        // Predicated region
        $region61: #{tpu_custom_call.1} parent=43 // pred_check
          %p1095 = pneg %p1094
        $region62: #{tpu_custom_call.1} parent=43 // pred_check_branch
          %1097 = sbr.rel (%p1095) target = $region64
        $region63: #{tpu_custom_call.1} parent=43 // pred_region
          %v1098 = vld [vmem:[#allocation8] sm:$0xff]
          %v1099 = vld [vmem:[#allocation8 + $0x8] sm:$0xff]
          %v1100 = vld [vmem:[#allocation8 + $0x10] sm:$0xff]
          %v1101 = vld [vmem:[#allocation8 + $0x18] sm:$0xff]
          %v1102 = vld [vmem:[#allocation8 + $0x20] sm:$0xff]
          %v1103 = vld [vmem:[#allocation8 + $0x28] sm:$0xff]
          %v1104 = vld [vmem:[#allocation8 + $0x30] sm:$0xff]
          %v1105 = vld [vmem:[#allocation8 + $0x38] sm:$0xff]
          %v1106 = vld [vmem:[#allocation8 + $0x40] sm:$0xff]
          %v1107 = vld [vmem:[#allocation8 + $0x48] sm:$0xff]
          %v1108 = vld [vmem:[#allocation8 + $0x50] sm:$0xff]
          %v1109 = vld [vmem:[#allocation8 + $0x58] sm:$0xff]
          %v1110 = vld [vmem:[#allocation8 + $0x60] sm:$0xff]
          %v1111 = vld [vmem:[#allocation8 + $0x68] sm:$0xff]
          %v1112 = vld [vmem:[#allocation8 + $0x70] sm:$0xff]
          %v1113 = vld [vmem:[#allocation8 + $0x78] sm:$0xff]
          %v1114 = vld [vmem:[#allocation8 + $0x80] sm:$0xff]
          %v1115 = vld [vmem:[#allocation8 + $0x88] sm:$0xff]
          %v1116 = vld [vmem:[#allocation8 + $0x90] sm:$0xff]
          %v1117 = vld [vmem:[#allocation8 + $0x98] sm:$0xff]
          %v1118 = vld [vmem:[#allocation8 + $0xa0] sm:$0xff]
          %v1119 = vld [vmem:[#allocation8 + $0xa8] sm:$0xff]
          %v1120 = vld [vmem:[#allocation8 + $0xb0] sm:$0xff]
          %v1121 = vld [vmem:[#allocation8 + $0xb8] sm:$0xff]
          %v1122 = vld [vmem:[#allocation8 + $0xc0] sm:$0xff]
          %v1123 = vld [vmem:[#allocation8 + $0xc8] sm:$0xff]
          %v1124 = vld [vmem:[#allocation8 + $0xd0] sm:$0xff]
          %v1125 = vld [vmem:[#allocation8 + $0xd8] sm:$0xff]
          %v1126 = vld [vmem:[#allocation8 + $0xe0] sm:$0xff]
          %v1127 = vld [vmem:[#allocation8 + $0xe8] sm:$0xff]
          %v1128 = vld [vmem:[#allocation8 + $0xf0] sm:$0xff]
          %v1129 = vld [vmem:[#allocation8 + $0xf8] sm:$0xff]
          %v1130 = vadd.f32 %v1098, %v936
          %v1131 = vadd.f32 %v1099, %v938
          %v1132 = vadd.f32 %v1100, %v940
          %v1133 = vadd.f32 %v1101, %v942
          %v1134 = vadd.f32 %v1102, %v946
          %v1135 = vadd.f32 %v1103, %v948
          %v1136 = vadd.f32 %v1104, %v950
          %v1137 = vadd.f32 %v1105, %v952
          %v1138 = vadd.f32 %v1106, %v956
          %v1139 = vadd.f32 %v1107, %v958
          %v1140 = vadd.f32 %v1108, %v960
          %v1141 = vadd.f32 %v1109, %v962
          %v1142 = vadd.f32 %v1110, %v966
          %v1143 = vadd.f32 %v1111, %v968
          %v1144 = vadd.f32 %v1112, %v970
          %v1145 = vadd.f32 %v1113, %v972
          %v1146 = vadd.f32 %v1114, %v976
          %v1147 = vadd.f32 %v1115, %v978
          %v1148 = vadd.f32 %v1116, %v980
          %v1149 = vadd.f32 %v1117, %v982
          %v1150 = vadd.f32 %v1118, %v986
          %v1151 = vadd.f32 %v1119, %v988
          %v1152 = vadd.f32 %v1120, %v990
          %v1153 = vadd.f32 %v1121, %v992
          %v1154 = vadd.f32 %v1122, %v996
          %v1155 = vadd.f32 %v1123, %v998
          %v1156 = vadd.f32 %v1124, %v1000
          %v1157 = vadd.f32 %v1125, %v1002
          %v1158 = vadd.f32 %v1126, %v1006
          %v1159 = vadd.f32 %v1127, %v1008
          %v1160 = vadd.f32 %v1128, %v1010
          %v1161 = vadd.f32 %v1129, %v1012
          %1162 = vst [vmem:[#allocation8] sm:$0xff] %v1130
          %1163 = vst [vmem:[#allocation8 + $0x8] sm:$0xff] %v1131
          %1164 = vst [vmem:[#allocation8 + $0x10] sm:$0xff] %v1132
          %1165 = vst [vmem:[#allocation8 + $0x18] sm:$0xff] %v1133
          %1166 = vst [vmem:[#allocation8 + $0x20] sm:$0xff] %v1134
          %1167 = vst [vmem:[#allocation8 + $0x28] sm:$0xff] %v1135
          %1168 = vst [vmem:[#allocation8 + $0x30] sm:$0xff] %v1136
          %1169 = vst [vmem:[#allocation8 + $0x38] sm:$0xff] %v1137
          %1170 = vst [vmem:[#allocation8 + $0x40] sm:$0xff] %v1138
          %1171 = vst [vmem:[#allocation8 + $0x48] sm:$0xff] %v1139
          %1172 = vst [vmem:[#allocation8 + $0x50] sm:$0xff] %v1140
          %1173 = vst [vmem:[#allocation8 + $0x58] sm:$0xff] %v1141
          %1174 = vst [vmem:[#allocation8 + $0x60] sm:$0xff] %v1142
          %1175 = vst [vmem:[#allocation8 + $0x68] sm:$0xff] %v1143
          %1176 = vst [vmem:[#allocation8 + $0x70] sm:$0xff] %v1144
          %1177 = vst [vmem:[#allocation8 + $0x78] sm:$0xff] %v1145
          %1178 = vst [vmem:[#allocation8 + $0x80] sm:$0xff] %v1146
          %1179 = vst [vmem:[#allocation8 + $0x88] sm:$0xff] %v1147
          %1180 = vst [vmem:[#allocation8 + $0x90] sm:$0xff] %v1148
          %1181 = vst [vmem:[#allocation8 + $0x98] sm:$0xff] %v1149
          %1182 = vst [vmem:[#allocation8 + $0xa0] sm:$0xff] %v1150
          %1183 = vst [vmem:[#allocation8 + $0xa8] sm:$0xff] %v1151
          %1184 = vst [vmem:[#allocation8 + $0xb0] sm:$0xff] %v1152
          %1185 = vst [vmem:[#allocation8 + $0xb8] sm:$0xff] %v1153
          %1186 = vst [vmem:[#allocation8 + $0xc0] sm:$0xff] %v1154
          %1187 = vst [vmem:[#allocation8 + $0xc8] sm:$0xff] %v1155
          %1188 = vst [vmem:[#allocation8 + $0xd0] sm:$0xff] %v1156
          %1189 = vst [vmem:[#allocation8 + $0xd8] sm:$0xff] %v1157
          %1190 = vst [vmem:[#allocation8 + $0xe0] sm:$0xff] %v1158
          %1191 = vst [vmem:[#allocation8 + $0xe8] sm:$0xff] %v1159
          %1192 = vst [vmem:[#allocation8 + $0xf0] sm:$0xff] %v1160
          %1193 = vst [vmem:[#allocation8 + $0xf8] sm:$0xff] %v1161
        $region64: #{tpu_custom_call.1} parent=43 // pred_fallthru
          _
        // Predicated region
        $region65: #{tpu_custom_call.1} parent=43 // pred_check
          %p1194 = pneg %p205
        $region66: #{tpu_custom_call.1} parent=43 // pred_check_branch
          %1196 = sbr.rel (%p1194) target = $region68
        $region67: #{tpu_custom_call.1} parent=43 // pred_region
          %s1197 = smul.u32 2, %s26
          %s1199 = ssub.s32 4096, 4096
          %1200 = vsyncadd [#allocation4], %s1199
          %s1201 = smul.addr %s1197, 128
          %s1202 = scalar_lea.hbm %s6, %s1201
          %s1203 = sshll.u32 [#allocation8], 4
          %s1204 = int_to_ptr.vmem [resolvable:$true] %s1203
          %1209 = dma.vmem_to_hbm [thread:$0]  %s1204, 4096, %s1202, [#allocation4], 256, 256, 16
        $region68: #{tpu_custom_call.1} parent=43 // pred_fallthru
          _
        // Predicated region
        $region69: #{tpu_custom_call.1} parent=43 // pred_check
          %p1210 = pneg %p205
        $region70: #{tpu_custom_call.1} parent=43 // pred_check_branch
          %1212 = sbr.rel (%p1210) target = $region72
        $region71: #{tpu_custom_call.1} parent=43 // pred_region
          %1213 = dma.done [#allocation4], 4096
        $region72: #{tpu_custom_call.1} parent=43 // pred_fallthru
          _
      $region44: #{tpu_custom_call.1} parent=5 // pred_fallthru
        _
      %p1214 = scmp.le.s32.totalorder 2, %s17
      // Predicated region
      $region73: #{tpu_custom_call.1} parent=5 // pred_check
        %p1215 = pneg %p1214
      $region74: #{tpu_custom_call.1} parent=5 // pred_check_branch
        %1217 = sbr.rel (%p1215) target = $region76
      $region75: #{tpu_custom_call.1} parent=5 // pred_region
        %s1218 = ssub.s32 %s17, 2
      $region76: #{tpu_custom_call.1} parent=5 // pred_fallthru
        _
    $region6: #{tpu_custom_call.1} parent=1 // loop_footer
      %s21 = sadd.s32 1, %s17
    $region7: #{tpu_custom_call.1} parent=1 // loop_footer_branch
      %16 = sbr.rel target = $region3
    $region8: #{tpu_custom_call.1} parent=1 // loop_exit
      _
    %1219 = vsyncpa [#allocation3], 1
    %s1220 = scalar_lea.sflag [#allocation3], 1
    %1221 = vsyncpa %s1220, 1
    %1222 = vsyncpa [#allocation6], 1
    %s1223 = scalar_lea.sflag [#allocation6], 1
    %1224 = vsyncpa %s1223, 1
    %1225 = vsyncpa [#allocation4], 1
    %s1226 = scalar_lea.sflag [#allocation4], 1
    %1227 = vsyncpa %s1226, 1

</llo_original>
